<compile_context>
chip_gen: v6e
topology: v6e:2x2x1
jax: 0.10.0
libtpu: 0.0.40
codegen_flags: <defaults>
</compile_context>

<pallas_src>
import functools

import jax
import jax.numpy as jnp
from jax.experimental import pallas as pl
from jax.experimental.pallas import tpu as pltpu


def _fm_kernel(x_ref, out_ref, s_acc, sq_acc, *, reduce_sum, num_fields, field_tile):
    # x_ref: (TB, TF, E); out_ref: (TB, 1) or (TB, E)
    # s_acc / sq_acc: (TB, E) f32 scratch, resident across the field grid axis.
    f = pl.program_id(1)

    @pl.when(f == 0)
    def _init():
        s_acc[...] = jnp.zeros_like(s_acc)
        sq_acc[...] = jnp.zeros_like(sq_acc)

    x = x_ref[...].astype(jnp.float32)                      # (TB, TF, E)

    if num_fields % field_tile != 0:
        # Last field block overhangs the array: zero out the padded rows so
        # they are neutral for both accumulators. (Static check: this branch
        # is not even compiled when F divides evenly.)
        fid = f * field_tile + jax.lax.broadcasted_iota(
            jnp.int32, (1, field_tile, x.shape[-1]), 1)
        x = jnp.where(fid < num_fields, x, 0.0)

    s_acc[...] += jnp.sum(x, axis=1)                        # sum_f x      (TB, E)
    sq_acc[...] += jnp.sum(x * x, axis=1)                   # sum_f x^2    (TB, E)

    @pl.when(f == pl.num_programs(1) - 1)
    def _finalize():
        s = s_acc[...]
        ix = s * s - sq_acc[...]                            # (TB, E)
        if reduce_sum:
            ix = jnp.sum(ix, axis=1, keepdims=True)         # (TB, 1)
        out_ref[...] = (0.5 * ix).astype(out_ref.dtype)


def factorization_layer(x, *, reduce_sum=True, batch_tile=None, field_tile=None):
    """x: (B, F, E). Returns (B, 1) if reduce_sum else (B, E)."""
    B, F, E = x.shape
    out_cols = 1 if reduce_sum else E
    itemsize = jnp.dtype(x.dtype).itemsize

    # ---- VMEM layout padding (lane -> 128, sublane -> 32 bytes / itemsize) ----
    sub = max(8, 32 // itemsize)
    e_pad = pl.cdiv(E, 128) * 128
    row_bytes_full = (pl.cdiv(F, sub) * sub) * e_pad * itemsize   # one batch row, full F

    # ---- field tile ----------------------------------------------------------
    max_in_block_bytes = 4 << 20           # per input block (x2 for double buffer)
    if field_tile is None:
        if 8 * row_bytes_full <= max_in_block_bytes:
            TF = F                          # common case: whole field dim in one block
        else:
            TF = max(sub, (max_in_block_bytes // (8 * e_pad * itemsize)) // sub * sub)
            TF = min(TF, F)
    else:
        TF = F if field_tile >= F else max(8, (field_tile // 8) * 8)

    # ---- batch tile ----------------------------------------------------------
    row_bytes = (pl.cdiv(TF, sub) * sub) * e_pad * itemsize
    if batch_tile is None:
        target_tile_bytes = 2 << 20
        TB = max(8, (target_tile_bytes // row_bytes) // 8 * 8)
    else:
        TB = batch_tile
    if B <= TB:
        TB = B                              # single full-extent batch block
    else:
        TB = max(8, (TB // 8) * 8)          # keep block sublane-aligned

    grid = (pl.cdiv(B, TB), pl.cdiv(F, TF))

    # Advisory cost: ~4 flops/element; bytes = stream x once + write output.
    cost = pl.CostEstimate(
        flops=4 * B * F * E,
        transcendentals=0,
        bytes_accessed=B * F * E * itemsize + B * out_cols * itemsize,
    )

    kernel = functools.partial(
        _fm_kernel, reduce_sum=reduce_sum, num_fields=F, field_tile=TF)

    return pl.pallas_call(
        kernel,
        out_shape=jax.ShapeDtypeStruct((B, out_cols), x.dtype),
        grid_spec=pltpu.PrefetchScalarGridSpec(
            num_scalar_prefetch=0,
            grid=grid,
            in_specs=[
                # Last two block dims are either full extents or 8-aligned,
                # so the (8, 128) rule is satisfied for any F/E.
                pl.BlockSpec((TB, TF, E), lambda i, f: (i, f, 0)),
            ],
            out_specs=pl.BlockSpec((TB, out_cols), lambda i, f: (i, 0)),
            scratch_shapes=[
                pltpu.VMEM((TB, E), jnp.float32),   # sum_f x
                pltpu.VMEM((TB, E), jnp.float32),   # sum_f x^2
            ],
        ),
        compiler_params=pltpu.CompilerParams(
            dimension_semantics=("parallel", "arbitrary")),
        cost_estimate=cost,
    )(x)


def factorization_layer_ref(x, *, reduce_sum=True):
    """Pure-JAX reference mirroring the PyTorch forward (f32 math)."""
    xf = x.astype(jnp.float32)
    square_of_sum = jnp.sum(xf, axis=1) ** 2
    sum_of_square = jnp.sum(xf ** 2, axis=1)
    ix = square_of_sum - sum_of_square
    if reduce_sum:
        ix = jnp.sum(ix, axis=1, keepdims=True)
    return (0.5 * ix).astype(x.dtype)


if __name__ == "__main__":
    key = jax.random.PRNGKey(0)
    B, F, E = 8, 4, 32   # batch, num_fields, embed_dim

    x = jax.random.normal(key, (B, F, E), dtype=jnp.float32)

    # reduce_sum=True (module default): (B, 1) output.
    out = jax.block_until_ready(factorization_layer(x, reduce_sum=True))
    ref = factorization_layer_ref(x, reduce_sum=True)
    assert out.shape == (B, 1)
    assert jnp.allclose(out, ref, atol=1e-5, rtol=1e-5)

    # reduce_sum=False: (B, E) output.
    out2 = jax.block_until_ready(factorization_layer(x, reduce_sum=False))
    ref2 = factorization_layer_ref(x, reduce_sum=False)
    assert out2.shape == (B, E)
    assert jnp.allclose(out2, ref2, atol=1e-5, rtol=1e-5)

    # Multi-tile batch with a ragged last block (no host-side padding copy).
    k2 = jax.random.PRNGKey(1)
    xt = jax.random.normal(k2, (20, F, E), dtype=jnp.float32)
    out3 = jax.block_until_ready(
        factorization_layer(xt, reduce_sum=True, batch_tile=8))
    assert out3.shape == (20, 1)
    assert jnp.allclose(out3, factorization_layer_ref(xt), atol=1e-5, rtol=1e-5)

    # Field-tiled path with a ragged last field block (in-kernel masking).
    k3 = jax.random.PRNGKey(2)
    xf_in = jax.random.normal(k3, (16, 12, 32), dtype=jnp.float32)
    out4 = jax.block_until_ready(
        factorization_layer(xf_in, reduce_sum=True, batch_tile=8, field_tile=8))
    assert out4.shape == (16, 1)
    assert jnp.allclose(out4, factorization_layer_ref(xf_in), atol=1e-5, rtol=1e-5)

    # bf16 I/O (halves HBM traffic), f32 accumulation inside the kernel.
    xb = x.astype(jnp.bfloat16)
    out5 = jax.block_until_ready(factorization_layer(xb, reduce_sum=True))
    ref5 = factorization_layer_ref(xb, reduce_sum=True)
    assert jnp.allclose(out5.astype(jnp.float32), ref5.astype(jnp.float32),
                        atol=1e-2, rtol=1e-2)

    print("KERNEL_OK")
</pallas_src>

<mosaic_0001>
module attributes {stable_mosaic.version = 11 : i64} {
  func.func @_fm_kernel(%arg0: i32, %arg1: i32, %arg2: memref<8x4x32xf32, #tpu.memory_space<vmem>>, %arg3: memref<8x1xf32, #tpu.memory_space<vmem>>, %arg4: memref<8x32xf32, #tpu.memory_space<vmem>>, %arg5: memref<8x32xf32, #tpu.memory_space<vmem>>) attributes {dimension_semantics = [#tpu.dimension_semantics<parallel>, #tpu.dimension_semantics<arbitrary>], iteration_bounds = array<i64: 1, 1>, scalar_prefetch = 0 : i64, scratch_operands = 2 : i64, tpu.core_type = #tpu.core_type<tc>, window_params = [{transform_indices = @transform_0, window_bounds = array<i64: 8, 4, 32>}, {transform_indices = @transform_1, window_bounds = array<i64: 8, 1>}]} {
    %c0_i32 = arith.constant 0 : i32
    %0 = arith.cmpi eq, %arg1, %c0_i32 : i32
    %1 = arith.extui %0 : i1 to i32
    %c0_i32_0 = arith.constant 0 : i32
    %2 = arith.cmpi ne, %1, %c0_i32_0 : i32
    scf.if %2 {
      %cst_14 = arith.constant 0.000000e+00 : f32
      %16 = vector.broadcast %cst_14 : f32 to vector<8x32xf32>
      %c0_15 = arith.constant 0 : index
      %c0_16 = arith.constant 0 : index
      %17 = vector.load %arg4[%c0_15, %c0_16] : memref<8x32xf32, #tpu.memory_space<vmem>>, vector<8x32xf32>
      tpu.vector_store %arg4[%c0_15, %c0_16], %16 {strides = array<i32>} : memref<8x32xf32, #tpu.memory_space<vmem>>, vector<8x32xf32>,
      %cst_17 = arith.constant 0.000000e+00 : f32
      %18 = vector.broadcast %cst_17 : f32 to vector<8x32xf32>
      %c0_18 = arith.constant 0 : index
      %c0_19 = arith.constant 0 : index
      %19 = vector.load %arg5[%c0_18, %c0_19] : memref<8x32xf32, #tpu.memory_space<vmem>>, vector<8x32xf32>
      tpu.vector_store %arg5[%c0_18, %c0_19], %18 {strides = array<i32>} : memref<8x32xf32, #tpu.memory_space<vmem>>, vector<8x32xf32>,
    } else {
    }
    %c0 = arith.constant 0 : index
    %c0_1 = arith.constant 0 : index
    %c0_2 = arith.constant 0 : index
    %3 = vector.load %arg2[%c0, %c0_1, %c0_2] : memref<8x4x32xf32, #tpu.memory_space<vmem>>, vector<8x4x32xf32>
    %c0_3 = arith.constant 0 : index
    %c0_4 = arith.constant 0 : index
    %4 = vector.load %arg4[%c0_3, %c0_4] : memref<8x32xf32, #tpu.memory_space<vmem>>, vector<8x32xf32>
    %cst = arith.constant dense<0.000000e+00> : vector<8x32xf32>
    %5 = vector.multi_reduction <add>, %3, %cst [1] : vector<8x4x32xf32> to vector<8x32xf32>
    %6 = arith.addf %4, %5 : vector<8x32xf32>
    %c0_5 = arith.constant 0 : index
    %c0_6 = arith.constant 0 : index
    %7 = vector.load %arg4[%c0_5, %c0_6] : memref<8x32xf32, #tpu.memory_space<vmem>>, vector<8x32xf32>
    tpu.vector_store %arg4[%c0_5, %c0_6], %6 {strides = array<i32>} : memref<8x32xf32, #tpu.memory_space<vmem>>, vector<8x32xf32>,
    %c0_7 = arith.constant 0 : index
    %c0_8 = arith.constant 0 : index
    %8 = vector.load %arg5[%c0_7, %c0_8] : memref<8x32xf32, #tpu.memory_space<vmem>>, vector<8x32xf32>
    %9 = arith.mulf %3, %3 : vector<8x4x32xf32>
    %cst_9 = arith.constant dense<0.000000e+00> : vector<8x32xf32>
    %10 = vector.multi_reduction <add>, %9, %cst_9 [1] : vector<8x4x32xf32> to vector<8x32xf32>
    %11 = arith.addf %8, %10 : vector<8x32xf32>
    %c0_10 = arith.constant 0 : index
    %c0_11 = arith.constant 0 : index
    %12 = vector.load %arg5[%c0_10, %c0_11] : memref<8x32xf32, #tpu.memory_space<vmem>>, vector<8x32xf32>
    tpu.vector_store %arg5[%c0_10, %c0_11], %11 {strides = array<i32>} : memref<8x32xf32, #tpu.memory_space<vmem>>, vector<8x32xf32>,
    %c0_i32_12 = arith.constant 0 : i32
    %13 = arith.cmpi eq, %arg1, %c0_i32_12 : i32
    %14 = arith.extui %13 : i1 to i32
    %c0_i32_13 = arith.constant 0 : i32
    %15 = arith.cmpi ne, %14, %c0_i32_13 : i32
    scf.if %15 {
      %c0_14 = arith.constant 0 : index
      %c0_15 = arith.constant 0 : index
      %16 = vector.load %arg4[%c0_14, %c0_15] : memref<8x32xf32, #tpu.memory_space<vmem>>, vector<8x32xf32>
      %17 = arith.mulf %16, %16 : vector<8x32xf32>
      %c0_16 = arith.constant 0 : index
      %c0_17 = arith.constant 0 : index
      %18 = vector.load %arg5[%c0_16, %c0_17] : memref<8x32xf32, #tpu.memory_space<vmem>>, vector<8x32xf32>
      %19 = arith.subf %17, %18 : vector<8x32xf32>
      %cst_18 = arith.constant dense<0.000000e+00> : vector<8xf32>
      %20 = vector.multi_reduction <add>, %19, %cst_18 [1] : vector<8x32xf32> to vector<8xf32>
      %21 = vector.shape_cast %20 : vector<8xf32> to vector<8x1xf32>
      %cst_19 = arith.constant 5.000000e-01 : f32
      %22 = vector.broadcast %cst_19 : f32 to vector<8x1xf32>
      %23 = arith.mulf %22, %21 : vector<8x1xf32>
      %c0_20 = arith.constant 0 : index
      %c0_21 = arith.constant 0 : index
      %24 = vector.load %arg3[%c0_20, %c0_21] : memref<8x1xf32, #tpu.memory_space<vmem>>, vector<8x1xf32>
      tpu.vector_store %arg3[%c0_20, %c0_21], %23 {strides = array<i32>} : memref<8x1xf32, #tpu.memory_space<vmem>>, vector<8x1xf32>,
    } else {
    }
    return
  }
  func.func @transform_0(%arg0: i32, %arg1: i32) -> (i32, i32, i32) {
    %c0_i32 = arith.constant 0 : i32
    %c0_i32_0 = arith.constant 0 : i32
    return %arg0, %arg1, %c0_i32 : i32, i32, i32
  }
  func.func @transform_1(%arg0: i32, %arg1: i32) -> (i32, i32) {
    %c0_i32 = arith.constant 0 : i32
    %c0_i32_0 = arith.constant 0 : i32
    return %arg0, %c0_i32 : i32, i32
  }
}

</mosaic_0001>

<llo_original>
// kernel: tpu_custom_call.1
$region0: #{tpu_custom_call.1}
  #allocation0 [shape = 'u32[]', space=smem, size = 0x4, offset = 0x4, fixed_abs, tag = 'smem constant byte address 0x4 - core index']
  #allocation1 [shape = 'u32[144,128]{1,0:T(1,128)}', space=vmem, size = 0x12000, scoped, tag = 'internal scratch']
  #allocation2 [shape = 'f32[8,32]{1,0:T(8,128)}', space=vmem, size = 0x1000, scoped, tag = 'scratch operand']
  #allocation3 [shape = 'f32[8,32]{1,0:T(8,128)}', space=vmem, size = 0x1000, scoped, tag = 'scratch operand']
  %s0 = inlined_call_operand.hbm [shape: f32[8,4,32], index: 0, kind: input, shape index: {}]
  %s1 = inlined_call_operand.vmem [shape: f32[8,1], index: 1, kind: output, shape index: {}]
  %s2 = sld [smem:[#allocation0]]
  $region26: #{tpu_custom_call.1} parent=0
    _
  %s4 = ssub.s32 1, %s2
  %s5 = scalar_select 0, %s4, %s2
  $region1: #{tpu_custom_call.1} parent=0
    #allocation4 [shape = 'u8[16384]{0}', space=vmem, size = 0x4000, scoped, tag = 'input window, operand 0, single buffered']
    #allocation5 [shape = 's32[1]{0}', space=sflag, size = 0x4, scoped, tag = 'scoped memory for tpu_custom_call.1']
    %6 = vsyncpa [#allocation5], 0
    // Predicated region
    $region2: #{tpu_custom_call.1} parent=1 // pred_check
      _
    $region3: #{tpu_custom_call.1} parent=1 // pred_check_branch
      %8 = sbr.rel (0) target = $region5
    $region4: #{tpu_custom_call.1} parent=1 // pred_region
      %s10 = ssub.s32 512, 512
      %11 = vsyncadd [#allocation5], %s10
      %s12 = sshll.u32 [#allocation4], 4
      %s13 = int_to_ptr.vmem [resolvable:$true] %s12
      %18 = dma.hbm_to_vmem [thread:$0]  %s0, 512, %s13, [#allocation5], 64, 64, 4
    $region5: #{tpu_custom_call.1} parent=1 // pred_fallthru
      _
    // Predicated region
    $region6: #{tpu_custom_call.1} parent=1 // pred_check
      _
    $region7: #{tpu_custom_call.1} parent=1 // pred_check_branch
      %20 = sbr.rel (0) target = $region9
    $region8: #{tpu_custom_call.1} parent=1 // pred_region
      %21 = dma.done [#allocation5], 512
    $region9: #{tpu_custom_call.1} parent=1 // pred_fallthru
      _
    %p22 = scmp.eq.s32.totalorder 0, 0
    // Predicated region
    $region10: #{tpu_custom_call.1} parent=1 // pred_check
      %p23 = pneg %p22
    $region11: #{tpu_custom_call.1} parent=1 // pred_check_branch
      %25 = sbr.rel (%p23) target = $region13
    $region12: #{tpu_custom_call.1} parent=1 // pred_region
      %vm26 = vcmask 261120
      %27 = vst.msk [vmem:[#allocation2] sm:$0xff] %vm26, 0.0
      %28 = vst.msk [vmem:[#allocation3] sm:$0xff] %vm26, 0.0
    $region13: #{tpu_custom_call.1} parent=1 // pred_fallthru
      _
    %v29 = vld [vmem:[#allocation4] sm:$0xf]
    %v30 = vld [vmem:[#allocation4 + $0x4] sm:$0xf]
    %v31 = vld [vmem:[#allocation4 + $0x8] sm:$0xf]
    %v32 = vld [vmem:[#allocation4 + $0xc] sm:$0xf]
    %v33 = vld [vmem:[#allocation4 + $0x10] sm:$0xf]
    %v34 = vld [vmem:[#allocation4 + $0x14] sm:$0xf]
    %v35 = vld [vmem:[#allocation4 + $0x18] sm:$0xf]
    %v36 = vld [vmem:[#allocation4 + $0x1c] sm:$0xf]
    %v37 = vld [vmem:[#allocation2] sm:$0xff]
    %vm38 = vcmask 257024
    %v39 = vsel %vm38, %v29, 0.0
    %v40 = vrot.slane %v39, 4
    %v41 = vadd.f32 %v39, %v40
    %v42 = vrot.slane %v41, 2
    %v43 = vadd.f32 %v41, %v42
    %v44 = vrot.slane %v43, 1
    %v45 = vadd.f32 %v43, %v44
    %v46 = vsel %vm38, %v30, 0.0
    %v47 = vrot.slane %v46, 4
    %v48 = vadd.f32 %v46, %v47
    %v49 = vrot.slane %v48, 2
    %v50 = vadd.f32 %v48, %v49
    %v51 = vrot.slane %v50, 1
    %v52 = vadd.f32 %v50, %v51
    %v53 = vsel %vm38, %v31, 0.0
    %v54 = vrot.slane %v53, 4
    %v55 = vadd.f32 %v53, %v54
    %v56 = vrot.slane %v55, 2
    %v57 = vadd.f32 %v55, %v56
    %v58 = vrot.slane %v57, 1
    %v59 = vadd.f32 %v57, %v58
    %v60 = vsel %vm38, %v32, 0.0
    %v61 = vrot.slane %v60, 4
    %v62 = vadd.f32 %v60, %v61
    %v63 = vrot.slane %v62, 2
    %v64 = vadd.f32 %v62, %v63
    %v65 = vrot.slane %v64, 1
    %v66 = vadd.f32 %v64, %v65
    %v67 = vsel %vm38, %v33, 0.0
    %v68 = vrot.slane %v67, 4
    %v69 = vadd.f32 %v67, %v68
    %v70 = vrot.slane %v69, 2
    %v71 = vadd.f32 %v69, %v70
    %v72 = vrot.slane %v71, 1
    %v73 = vadd.f32 %v71, %v72
    %v74 = vsel %vm38, %v34, 0.0
    %v75 = vrot.slane %v74, 4
    %v76 = vadd.f32 %v74, %v75
    %v77 = vrot.slane %v76, 2
    %v78 = vadd.f32 %v76, %v77
    %v79 = vrot.slane %v78, 1
    %v80 = vadd.f32 %v78, %v79
    %v81 = vsel %vm38, %v35, 0.0
    %v82 = vrot.slane %v81, 4
    %v83 = vadd.f32 %v81, %v82
    %v84 = vrot.slane %v83, 2
    %v85 = vadd.f32 %v83, %v84
    %v86 = vrot.slane %v85, 1
    %v87 = vadd.f32 %v85, %v86
    %v88 = vsel %vm38, %v36, 0.0
    %v89 = vrot.slane %v88, 4
    %v90 = vadd.f32 %v88, %v89
    %v91 = vrot.slane %v90, 2
    %v92 = vadd.f32 %v90, %v91
    %v93 = vrot.slane %v92, 1
    %v94 = vadd.f32 %v92, %v93
    %vm103 = vcmask 1041409
    %v104 = vsel %vm103, %v52, %v45
    %vm105 = vcmask 1042434
    %v106 = vsel %vm105, %v59, %v104
    %vm107 = vcmask 1043459
    %v108 = vsel %vm107, %v66, %v106
    %vm109 = vcmask 1044484
    %v110 = vsel %vm109, %v73, %v108
    %vm111 = vcmask 1045509
    %v112 = vsel %vm111, %v80, %v110
    %vm113 = vcmask 1046534
    %v114 = vsel %vm113, %v87, %v112
    %vm115 = vcmask 1047559
    %v116 = vsel %vm115, %v94, %v114
    %v118 = vadd.f32 %v37, %v116
    %vm119 = vcmask 261120
    %120 = vst.msk [vmem:[#allocation2] sm:$0xff] %vm119, %v118
    %v121 = vld [vmem:[#allocation3] sm:$0xff]
    %v122 = vmul.f32 %v29, %v29
    %v123 = vmul.f32 %v30, %v30
    %v124 = vmul.f32 %v31, %v31
    %v125 = vmul.f32 %v32, %v32
    %v126 = vmul.f32 %v33, %v33
    %v127 = vmul.f32 %v34, %v34
    %v128 = vmul.f32 %v35, %v35
    %v129 = vmul.f32 %v36, %v36
    %v130 = vsel %vm38, %v122, 0.0
    %v131 = vrot.slane %v130, 4
    %v132 = vadd.f32 %v130, %v131
    %v133 = vrot.slane %v132, 2
    %v134 = vadd.f32 %v132, %v133
    %v135 = vrot.slane %v134, 1
    %v136 = vadd.f32 %v134, %v135
    %v137 = vsel %vm38, %v123, 0.0
    %v138 = vrot.slane %v137, 4
    %v139 = vadd.f32 %v137, %v138
    %v140 = vrot.slane %v139, 2
    %v141 = vadd.f32 %v139, %v140
    %v142 = vrot.slane %v141, 1
    %v143 = vadd.f32 %v141, %v142
    %v144 = vsel %vm38, %v124, 0.0
    %v145 = vrot.slane %v144, 4
    %v146 = vadd.f32 %v144, %v145
    %v147 = vrot.slane %v146, 2
    %v148 = vadd.f32 %v146, %v147
    %v149 = vrot.slane %v148, 1
    %v150 = vadd.f32 %v148, %v149
    %v151 = vsel %vm38, %v125, 0.0
    %v152 = vrot.slane %v151, 4
    %v153 = vadd.f32 %v151, %v152
    %v154 = vrot.slane %v153, 2
    %v155 = vadd.f32 %v153, %v154
    %v156 = vrot.slane %v155, 1
    %v157 = vadd.f32 %v155, %v156
    %v158 = vsel %vm38, %v126, 0.0
    %v159 = vrot.slane %v158, 4
    %v160 = vadd.f32 %v158, %v159
    %v161 = vrot.slane %v160, 2
    %v162 = vadd.f32 %v160, %v161
    %v163 = vrot.slane %v162, 1
    %v164 = vadd.f32 %v162, %v163
    %v165 = vsel %vm38, %v127, 0.0
    %v166 = vrot.slane %v165, 4
    %v167 = vadd.f32 %v165, %v166
    %v168 = vrot.slane %v167, 2
    %v169 = vadd.f32 %v167, %v168
    %v170 = vrot.slane %v169, 1
    %v171 = vadd.f32 %v169, %v170
    %v172 = vsel %vm38, %v128, 0.0
    %v173 = vrot.slane %v172, 4
    %v174 = vadd.f32 %v172, %v173
    %v175 = vrot.slane %v174, 2
    %v176 = vadd.f32 %v174, %v175
    %v177 = vrot.slane %v176, 1
    %v178 = vadd.f32 %v176, %v177
    %v179 = vsel %vm38, %v129, 0.0
    %v180 = vrot.slane %v179, 4
    %v181 = vadd.f32 %v179, %v180
    %v182 = vrot.slane %v181, 2
    %v183 = vadd.f32 %v181, %v182
    %v184 = vrot.slane %v183, 1
    %v185 = vadd.f32 %v183, %v184
    %v194 = vsel %vm103, %v143, %v136
    %v195 = vsel %vm105, %v150, %v194
    %v196 = vsel %vm107, %v157, %v195
    %v197 = vsel %vm109, %v164, %v196
    %v198 = vsel %vm111, %v171, %v197
    %v199 = vsel %vm113, %v178, %v198
    %v200 = vsel %vm115, %v185, %v199
    %v202 = vadd.f32 %v121, %v200
    %203 = vst.msk [vmem:[#allocation3] sm:$0xff] %vm119, %v202
    // Predicated region
    $region14: #{tpu_custom_call.1} parent=1 // pred_check
      %p204 = pneg %p22
    $region15: #{tpu_custom_call.1} parent=1 // pred_check_branch
      %206 = sbr.rel (%p204) target = $region17
    $region16: #{tpu_custom_call.1} parent=1 // pred_region
      %v207 = vld [vmem:[#allocation2] sm:$0xff]
      %v208 = vmul.f32 %v207, %v207
      %v209 = vld [vmem:[#allocation3] sm:$0xff]
      %v210 = vsub.f32 %v208, %v209
      %v211 = vsel %vm119, %v210, 0.0
      %212 = vadd.xlane.f32.xlu0 %v211
      %v213 = vpop.xlane.xlu0 %212
      %v214 = vmul.f32 %v213, 0.5
      %vm215 = vcmask 7168
      %216 = vst.msk [vmem:[%s1] sm:$0xff] %vm215, %v214
    $region17: #{tpu_custom_call.1} parent=1 // pred_fallthru
      _
    // Predicated region
    $region18: #{tpu_custom_call.1} parent=1 // pred_check
      _
    $region19: #{tpu_custom_call.1} parent=1 // pred_check_branch
      %218 = sbr.rel (0) target = $region21
    $region20: #{tpu_custom_call.1} parent=1 // pred_region
      _
    $region21: #{tpu_custom_call.1} parent=1 // pred_fallthru
      _
    // Predicated region
    $region22: #{tpu_custom_call.1} parent=1 // pred_check
      _
    $region23: #{tpu_custom_call.1} parent=1 // pred_check_branch
      %220 = sbr.rel (0) target = $region25
    $region24: #{tpu_custom_call.1} parent=1 // pred_region
      _
    $region25: #{tpu_custom_call.1} parent=1 // pred_fallthru
      _
    %221 = vsyncpa [#allocation5], 1

</llo_original>
